<compile_context>
chip_gen: v6e
topology: v6e:2x2x1
jax: 0.10.0
libtpu: 0.0.40
codegen_flags: <defaults>
</compile_context>

<pallas_src>
import functools

import jax
import jax.numpy as jnp
from jax.experimental import pallas as pl
from jax.experimental.pallas import tpu as pltpu


def bond_kernel(x_ref, w_ref, b_ref, g_ref, beta_ref, invd_ref, mem_ref, o_ref):
    # Linear with the LayerNorm mean pre-folded into column-centered W / b:
    #   ycen == (x @ W + b) - mean_D(x @ W + b)
    # so no XLU mean reduction is needed here (MXU does it implicitly).
    ycen = jnp.dot(x_ref[...], w_ref[...], preferred_element_type=jnp.float32)
    ycen = ycen + b_ref[...]                              # (tm,D) + (1,D)

    # Row variance via an MXU dot with a resident (D,1) column of 1/D:
    # keeps the second cross-lane reduction off the XLU as well.
    var = jnp.dot(ycen * ycen, invd_ref[...],
                  preferred_element_type=jnp.float32)     # (tm, 1)

    # gamma folded into the inverse-std scale; fused affine + residual add.
    scale = g_ref[...] * jax.lax.rsqrt(var + 1e-6)        # (1,D)*(tm,1)->(tm,D)
    o_ref[...] = (mem_ref[...].astype(jnp.float32)
                  + ycen * scale + beta_ref[...]).astype(o_ref.dtype)


def _round_up(x, m):
    return ((x + m - 1) // m) * m


def _choose_tm(M, H, D):
    """Row tile: large (amortize per-step overhead), >=2 (ideally even) grid
    steps for v7x's two TensorCores, tiles + resident operands under 24 MiB."""
    target = 2048
    tm = max(8, min(target, _round_up(pl.cdiv(M, 2), 8)))
    # Double-buffered x/mem/out tiles + resident W / b / gamma / beta / invd
    # (f32 upper bound); keep under 24 MiB (explicit limit below is 32 MiB).
    resident = (H * D + 4 * D) * 4
    while tm > 8 and 2 * tm * (H + 2 * D) * 4 + resident > 24 * 1024 * 1024:
        tm = max(8, _round_up(tm // 2, 8))
    # Prefer an even number of grid steps (balanced across v7x's 2 TCs).
    steps = pl.cdiv(M, tm)
    if steps > 1 and steps % 2 == 1:
        tm = max(8, _round_up(pl.cdiv(M, steps + 1), 8))
    return tm


@functools.partial(
    jax.jit, static_argnames=("tm", "matmul_dtype", "donate_memory_bank"))
def bond_layer(memory_bank, style_represents, w, b, gamma, beta, *,
               tm=None, matmul_dtype=None, donate_memory_bank=False):
    """memory_bank: [B, S, D]; style_represents: [B, S, H]; w: [H, D] (i.e.
    the transpose of nn.Linear's weight); b/gamma/beta: [D]."""
    B, S, D = memory_bank.shape
    H = style_represents.shape[-1]
    M = B * S

    if tm is None:
        tm = _choose_tm(M, H, D)

    # Flatten (free reshapes; no padding copies -- Pallas masks the last block).
    x2d = style_represents.reshape(M, H)
    mem2d = memory_bank.reshape(M, D)

    # Fold the LayerNorm mean into the linear: center W's columns and the bias.
    w_f32 = w.astype(jnp.float32)
    b_f32 = b.astype(jnp.float32)
    w_c = w_f32 - jnp.mean(w_f32, axis=1, keepdims=True)          # [H, D]
    b_c = (b_f32 - jnp.mean(b_f32)).reshape(1, D)                 # [1, D]

    # Optional bf16 matmul operands (MXU-native; f32 accumulation preserved via
    # preferred_element_type).  Default f32 matches the PyTorch module.
    if matmul_dtype is not None:
        x2d = x2d.astype(matmul_dtype)
        w_in = w_c.astype(matmul_dtype)
    else:
        w_in = w_c

    gamma2 = gamma.astype(jnp.float32).reshape(1, D)
    beta2 = beta.astype(jnp.float32).reshape(1, D)
    invd = jnp.full((D, 1), 1.0 / D, dtype=jnp.float32)           # MXU reduce col

    grid = (pl.cdiv(M, tm),)
    kwargs = {}
    if donate_memory_bank:
        # memory_bank is the 7th positional operand (index 6); reuse its buffer.
        kwargs["input_output_aliases"] = {6: 0}

    out = pl.pallas_call(
        bond_kernel,
        out_shape=jax.ShapeDtypeStruct((M, D), memory_bank.dtype),
        grid_spec=pltpu.PrefetchScalarGridSpec(
            num_scalar_prefetch=0,
            grid=grid,
            in_specs=[
                pl.BlockSpec((tm, H), lambda i: (i, 0)),   # style rows
                pl.BlockSpec((H, D), lambda i: (0, 0)),    # centered W, resident
                pl.BlockSpec((1, D), lambda i: (0, 0)),    # centered bias
                pl.BlockSpec((1, D), lambda i: (0, 0)),    # gamma
                pl.BlockSpec((1, D), lambda i: (0, 0)),    # beta
                pl.BlockSpec((D, 1), lambda i: (0, 0)),    # 1/D column (MXU reduce)
                pl.BlockSpec((tm, D), lambda i: (i, 0)),   # memory_bank rows
            ],
            out_specs=pl.BlockSpec((tm, D), lambda i: (i, 0)),
        ),
        compiler_params=pltpu.CompilerParams(
            dimension_semantics=("parallel",),
            vmem_limit_bytes=32 * 1024 * 1024,
        ),
        **kwargs,
    )(x2d, w_in, b_c, gamma2, beta2, invd, mem2d)

    return out.reshape(B, S, D)


def reference(memory_bank, style_represents, w, b, gamma, beta):
    sf = jnp.einsum("bsh,hd->bsd", style_represents, w) + b
    mu = jnp.mean(sf, axis=-1, keepdims=True)
    var = jnp.mean((sf - mu) ** 2, axis=-1, keepdims=True)
    sf = (sf - mu) / jnp.sqrt(var + 1e-6) * gamma + beta
    return memory_bank + sf


if __name__ == "__main__":
    # Small shapes consistent with the module: h_size=32, model_dim=128.
    H, D = 32, 128
    key = jax.random.PRNGKey(0)
    k_mem, k_style, k_w, k_b, k_g, k_beta = jax.random.split(key, 6)

    # nn.Linear(h_size, model_dim): weight [D, H], bias [D].  We store the
    # transposed weight [H, D] so the kernel matmul is x @ W.
    limit = (6.0 / (H + D)) ** 0.5  # xavier_uniform-style deterministic init
    w = jax.random.uniform(k_w, (H, D), minval=-limit, maxval=limit,
                           dtype=jnp.float32)
    b = jax.random.uniform(k_b, (D,), minval=-0.1, maxval=0.1,
                           dtype=jnp.float32)
    gamma = 1.0 + 0.01 * jax.random.normal(k_g, (D,), dtype=jnp.float32)
    beta = 0.01 * jax.random.normal(k_beta, (D,), dtype=jnp.float32)

    # Case 1: M divisible by the tile (B=2, S=8 -> M=16, 2 grid steps).
    B, S = 2, 8
    memory_bank = jax.random.normal(k_mem, (B, S, D), dtype=jnp.float32)
    style_represents = jax.random.normal(k_style, (B, S, H), dtype=jnp.float32)
    out = jax.block_until_ready(
        bond_layer(memory_bank, style_represents, w, b, gamma, beta))
    ref = reference(memory_bank, style_represents, w, b, gamma, beta)
    assert out.shape == (B, S, D)
    assert jnp.allclose(out, ref, atol=1e-5, rtol=1e-5), "mismatch vs reference"

    # Case 2: ragged M (B=2, S=7 -> M=14) exercises the masked partial block
    # path (no wrapper-side padding / slicing copies).
    B2, S2 = 2, 7
    mem2 = jax.random.normal(k_mem, (B2, S2, D), dtype=jnp.float32)
    sty2 = jax.random.normal(k_style, (B2, S2, H), dtype=jnp.float32)
    out2 = jax.block_until_ready(bond_layer(mem2, sty2, w, b, gamma, beta))
    ref2 = reference(mem2, sty2, w, b, gamma, beta)
    assert out2.shape == (B2, S2, D)
    assert jnp.allclose(out2, ref2, atol=1e-5, rtol=1e-5), "ragged mismatch"

    print("KERNEL_OK")
</pallas_src>

<mosaic_0001>
module attributes {stable_mosaic.version = 11 : i64} {
  func.func @bond_kernel(%arg0: i32, %arg1: memref<8x32xf32, #tpu.memory_space<vmem>>, %arg2: memref<32x128xf32, #tpu.memory_space<vmem>>, %arg3: memref<1x128xf32, #tpu.memory_space<vmem>>, %arg4: memref<1x128xf32, #tpu.memory_space<vmem>>, %arg5: memref<1x128xf32, #tpu.memory_space<vmem>>, %arg6: memref<128x1xf32, #tpu.memory_space<vmem>>, %arg7: memref<8x128xf32, #tpu.memory_space<vmem>>, %arg8: memref<8x128xf32, #tpu.memory_space<vmem>>) attributes {dimension_semantics = [#tpu.dimension_semantics<parallel>], iteration_bounds = array<i64: 2>, scalar_prefetch = 0 : i64, scratch_operands = 0 : i64, tpu.core_type = #tpu.core_type<tc>, window_params = [{transform_indices = @transform_0, window_bounds = array<i64: 8, 32>}, {pipeline_mode = #tpu.pipeline_mode<synchronous>, transform_indices = @transform_1, window_bounds = array<i64: 32, 128>}, {pipeline_mode = #tpu.pipeline_mode<synchronous>, transform_indices = @transform_2, window_bounds = array<i64: 1, 128>}, {pipeline_mode = #tpu.pipeline_mode<synchronous>, transform_indices = @transform_3, window_bounds = array<i64: 1, 128>}, {pipeline_mode = #tpu.pipeline_mode<synchronous>, transform_indices = @transform_4, window_bounds = array<i64: 1, 128>}, {pipeline_mode = #tpu.pipeline_mode<synchronous>, transform_indices = @transform_5, window_bounds = array<i64: 128, 1>}, {transform_indices = @transform_6, window_bounds = array<i64: 8, 128>}, {transform_indices = @transform_7, window_bounds = array<i64: 8, 128>}]} {
    %c0 = arith.constant 0 : index
    %c0_0 = arith.constant 0 : index
    %0 = vector.load %arg1[%c0, %c0_0] : memref<8x32xf32, #tpu.memory_space<vmem>>, vector<8x32xf32>
    %c0_1 = arith.constant 0 : index
    %c0_2 = arith.constant 0 : index
    %1 = vector.load %arg2[%c0_1, %c0_2] : memref<32x128xf32, #tpu.memory_space<vmem>>, vector<32x128xf32>
    %cst = arith.constant dense<0.000000e+00> : vector<8x128xf32>
    %2 = tpu.matmul %0, %1, %cst {dimension_numbers = #tpu.dot_dimension_numbers<[1], [0], [0], [1], [0, 0, 1, 1], [], []>} : vector<8x32xf32>, vector<32x128xf32>, vector<8x128xf32> -> vector<8x128xf32>
    %c0_3 = arith.constant 0 : index
    %c0_4 = arith.constant 0 : index
    %3 = vector.load %arg3[%c0_3, %c0_4] : memref<1x128xf32, #tpu.memory_space<vmem>>, vector<1x128xf32>
    %4 = vector.broadcast %3 : vector<1x128xf32> to vector<8x128xf32>
    %5 = arith.addf %2, %4 : vector<8x128xf32>
    %6 = arith.mulf %5, %5 : vector<8x128xf32>
    %c0_5 = arith.constant 0 : index
    %c0_6 = arith.constant 0 : index
    %7 = vector.load %arg6[%c0_5, %c0_6] : memref<128x1xf32, #tpu.memory_space<vmem>>, vector<128x1xf32>
    %cst_7 = arith.constant dense<0.000000e+00> : vector<8x1xf32>
    %8 = tpu.matmul %6, %7, %cst_7 {dimension_numbers = #tpu.dot_dimension_numbers<[1], [0], [0], [1], [0, 0, 1, 1], [], []>} : vector<8x128xf32>, vector<128x1xf32>, vector<8x1xf32> -> vector<8x1xf32>
    %c0_8 = arith.constant 0 : index
    %c0_9 = arith.constant 0 : index
    %9 = vector.load %arg4[%c0_8, %c0_9] : memref<1x128xf32, #tpu.memory_space<vmem>>, vector<1x128xf32>
    %cst_10 = arith.constant 9.99999997E-7 : f32
    %10 = vector.broadcast %cst_10 : f32 to vector<8x1xf32>
    %11 = arith.addf %8, %10 : vector<8x1xf32>
    %12 = math.rsqrt %11 : vector<8x1xf32>
    %13 = vector.broadcast %9 : vector<1x128xf32> to vector<8x128xf32>
    %14 = vector.broadcast %12 : vector<8x1xf32> to vector<8x128xf32>
    %15 = arith.mulf %13, %14 : vector<8x128xf32>
    %c0_11 = arith.constant 0 : index
    %c0_12 = arith.constant 0 : index
    %16 = vector.load %arg7[%c0_11, %c0_12] : memref<8x128xf32, #tpu.memory_space<vmem>>, vector<8x128xf32>
    %17 = arith.mulf %5, %15 : vector<8x128xf32>
    %18 = arith.addf %16, %17 : vector<8x128xf32>
    %c0_13 = arith.constant 0 : index
    %c0_14 = arith.constant 0 : index
    %19 = vector.load %arg5[%c0_13, %c0_14] : memref<1x128xf32, #tpu.memory_space<vmem>>, vector<1x128xf32>
    %20 = vector.broadcast %19 : vector<1x128xf32> to vector<8x128xf32>
    %21 = arith.addf %18, %20 : vector<8x128xf32>
    %c0_15 = arith.constant 0 : index
    %c0_16 = arith.constant 0 : index
    %22 = vector.load %arg8[%c0_15, %c0_16] : memref<8x128xf32, #tpu.memory_space<vmem>>, vector<8x128xf32>
    tpu.vector_store %arg8[%c0_15, %c0_16], %21 {strides = array<i32>} : memref<8x128xf32, #tpu.memory_space<vmem>>, vector<8x128xf32>,
    return
  }
  func.func @transform_0(%arg0: i32) -> (i32, i32) {
    %c0_i32 = arith.constant 0 : i32
    %c0_i32_0 = arith.constant 0 : i32
    return %arg0, %c0_i32 : i32, i32
  }
  func.func @transform_1(%arg0: i32) -> (i32, i32) {
    %c0_i32 = arith.constant 0 : i32
    %c0_i32_0 = arith.constant 0 : i32
    %c0_i32_1 = arith.constant 0 : i32
    return %c0_i32, %c0_i32_0 : i32, i32
  }
  func.func @transform_2(%arg0: i32) -> (i32, i32) {
    %c0_i32 = arith.constant 0 : i32
    %c0_i32_0 = arith.constant 0 : i32
    %c0_i32_1 = arith.constant 0 : i32
    return %c0_i32, %c0_i32_0 : i32, i32
  }
  func.func @transform_3(%arg0: i32) -> (i32, i32) {
    %c0_i32 = arith.constant 0 : i32
    %c0_i32_0 = arith.constant 0 : i32
    %c0_i32_1 = arith.constant 0 : i32
    return %c0_i32, %c0_i32_0 : i32, i32
  }
  func.func @transform_4(%arg0: i32) -> (i32, i32) {
    %c0_i32 = arith.constant 0 : i32
    %c0_i32_0 = arith.constant 0 : i32
    %c0_i32_1 = arith.constant 0 : i32
    return %c0_i32, %c0_i32_0 : i32, i32
  }
  func.func @transform_5(%arg0: i32) -> (i32, i32) {
    %c0_i32 = arith.constant 0 : i32
    %c0_i32_0 = arith.constant 0 : i32
    %c0_i32_1 = arith.constant 0 : i32
    return %c0_i32, %c0_i32_0 : i32, i32
  }
  func.func @transform_6(%arg0: i32) -> (i32, i32) {
    %c0_i32 = arith.constant 0 : i32
    %c0_i32_0 = arith.constant 0 : i32
    return %arg0, %c0_i32 : i32, i32
  }
  func.func @transform_7(%arg0: i32) -> (i32, i32) {
    %c0_i32 = arith.constant 0 : i32
    %c0_i32_0 = arith.constant 0 : i32
    return %arg0, %c0_i32 : i32, i32
  }
}

</mosaic_0001>

<llo_original>
// kernel: bond_layer.1
$region0: #{bond_layer.1}
  #allocation0 [shape = 'u32[]', space=smem, size = 0x4, offset = 0x4, fixed_abs, tag = 'smem constant byte address 0x4 - core index']
  #allocation1 [shape = 'u32[144,128]{1,0:T(1,128)}', space=vmem, size = 0x12000, scoped, tag = 'internal scratch']
  %s0 = inlined_call_operand.vmem [shape: f32[16,32], index: 0, kind: input, shape index: {}]
  %s1 = inlined_call_operand.vmem [shape: f32[32,128], index: 1, kind: input, shape index: {}]
  %s2 = inlined_call_operand.vmem [shape: f32[1,128], index: 2, kind: input, shape index: {}]
  %s3 = inlined_call_operand.vmem [shape: f32[1,128], index: 3, kind: input, shape index: {}]
  %s4 = inlined_call_operand.vmem [shape: f32[1,128], index: 4, kind: input, shape index: {}]
  %s5 = inlined_call_operand.vmem [shape: f32[128,1], index: 5, kind: input, shape index: {}]
  %s6 = inlined_call_operand.vmem [shape: f32[16,128], index: 6, kind: input, shape index: {}]
  %s7 = inlined_call_operand.hbm [shape: f32[16,128], index: 7, kind: output, shape index: {}]
  %s8 = sld [smem:[#allocation0]]
  $region61: #{bond_layer.1} parent=0
    _
  %s10 = ssub.s32 1, %s8
  %s11 = scalar_select 0, %s10, %s8
  $region1: #{bond_layer.1} parent=0
    #allocation2 [shape = 'u8[8192]{0}', space=vmem, size = 0x2000, scoped, tag = 'output window, operand 0']
    #allocation3 [shape = 's32[2]{0}', space=sflag, size = 0x8, scoped, tag = 'scoped memory for bond_layer.1']
    %12 = vsyncpa [#allocation3], 0
    %s13 = scalar_lea.sflag [#allocation3], 1
    %14 = vsyncpa %s13, 0
    loop: start=0, step=1, limit=4
    $region2: #{bond_layer.1} parent=1 // loop_pre_header
      _
    $region3: #{bond_layer.1} parent=1 // loop_header
      %s16 = sphi 0, %s20
      %p17 = scmp.ge.s32.totalorder %s16, 4
      %s26 = sphi 0, %s28
      %s29 = sphi 0, %s26
      %s30 = sphi 0, %s29
      %s46 = sphi 0, %s30
      %s50 = sphi 0, %s50
      %s52 = sphi 0, %s50
      %s53 = sphi 0, %s52
      %s67 = sphi 0, %s53
      %s71 = sphi 0, %s71
      %s73 = sphi 0, %s71
      %s74 = sphi 0, %s73
      %s88 = sphi 0, %s74
      %s92 = sphi 0, %s92
      %s94 = sphi 0, %s92
      %s95 = sphi 0, %s94
      %s109 = sphi 0, %s95
      %s113 = sphi 0, %s113
      %s115 = sphi 0, %s113
      %s116 = sphi 0, %s115
      %s130 = sphi 0, %s116
      %s134 = sphi 0, %s134
      %s136 = sphi 0, %s134
      %s137 = sphi 0, %s136
      %s151 = sphi 0, %s137
      %s157 = sphi 0, %s159
      %s160 = sphi 0, %s157
      %s161 = sphi 0, %s160
      %s177 = sphi 0, %s161
      %s183 = sphi 0, %s185
      %s186 = sphi 0, %s183
      %s187 = sphi 0, %s186
      %s203 = sphi 0, %s187
    $region4: #{bond_layer.1} parent=1 // loop_header_branch
      %19 = sbr.rel (%p17) target = $region8
    $region5: #{bond_layer.1} parent=1 // loop_body
      %s21 = ssub.s32 %s16, 1
      %s22 = ssub.s32 %s16, 2
      %s23 = sadd.s32 %s16, 1
      %s24 = ssub.s32 %s16, %s23
      %p25 = scmp.eq.s32.totalorder %s24, 0
      %s27 = sadd.s32 %s26, 1
      %s28 = scalar_select %p25, %s26, %s27
      %p31 = pneg %p25
      %p32 = scmp.eq.s32.totalorder %s16, 1
      %p33 = por %p31, %p32
      %p34 = scmp.ne.s32.totalorder %s26, %s29
      %p35 = scmp.eq.s32.totalorder %s16, 0
      %p36 = por %p34, %p35
      %p37 = scmp.ne.s32.totalorder %s26, %s29
      %p38 = scmp.eq.s32.totalorder %s21, 1
      %p39 = por %p37, %p38
      %p40 = scmp.ne.s32.totalorder %s29, %s30
      %p41 = scmp.eq.s32.totalorder %s21, 0
      %p42 = por %p40, %p41
      %p43 = scmp.ne.s32.totalorder %s29, %s30
      %p44 = scmp.eq.s32.totalorder %s22, 1
      %p45 = por %p43, %p44
      %p47 = scmp.ne.s32.totalorder %s30, %s46
      %p48 = scmp.eq.s32.totalorder %s22, 0
      %p49 = por %p47, %p48
      %s51 = sadd.s32 %s50, 1
      %p54 = scmp.eq.s32.totalorder %s16, 1
      %p55 = scmp.ne.s32.totalorder %s50, %s52
      %p56 = scmp.eq.s32.totalorder %s16, 0
      %p57 = por %p55, %p56
      %p58 = scmp.ne.s32.totalorder %s50, %s52
      %p59 = scmp.eq.s32.totalorder %s21, 1
      %p60 = por %p58, %p59
      %p61 = scmp.ne.s32.totalorder %s52, %s53
      %p62 = scmp.eq.s32.totalorder %s21, 0
      %p63 = por %p61, %p62
      %p64 = scmp.ne.s32.totalorder %s52, %s53
      %p65 = scmp.eq.s32.totalorder %s22, 1
      %p66 = por %p64, %p65
      %p68 = scmp.ne.s32.totalorder %s53, %s67
      %p69 = scmp.eq.s32.totalorder %s22, 0
      %p70 = por %p68, %p69
      %s72 = sadd.s32 %s71, 1
      %p75 = scmp.eq.s32.totalorder %s16, 1
      %p76 = scmp.ne.s32.totalorder %s71, %s73
      %p77 = scmp.eq.s32.totalorder %s16, 0
      %p78 = por %p76, %p77
      %p79 = scmp.ne.s32.totalorder %s71, %s73
      %p80 = scmp.eq.s32.totalorder %s21, 1
      %p81 = por %p79, %p80
      %p82 = scmp.ne.s32.totalorder %s73, %s74
      %p83 = scmp.eq.s32.totalorder %s21, 0
      %p84 = por %p82, %p83
      %p85 = scmp.ne.s32.totalorder %s73, %s74
      %p86 = scmp.eq.s32.totalorder %s22, 1
      %p87 = por %p85, %p86
      %p89 = scmp.ne.s32.totalorder %s74, %s88
      %p90 = scmp.eq.s32.totalorder %s22, 0
      %p91 = por %p89, %p90
      %s93 = sadd.s32 %s92, 1
      %p96 = scmp.eq.s32.totalorder %s16, 1
      %p97 = scmp.ne.s32.totalorder %s92, %s94
      %p98 = scmp.eq.s32.totalorder %s16, 0
      %p99 = por %p97, %p98
      %p100 = scmp.ne.s32.totalorder %s92, %s94
      %p101 = scmp.eq.s32.totalorder %s21, 1
      %p102 = por %p100, %p101
      %p103 = scmp.ne.s32.totalorder %s94, %s95
      %p104 = scmp.eq.s32.totalorder %s21, 0
      %p105 = por %p103, %p104
      %p106 = scmp.ne.s32.totalorder %s94, %s95
      %p107 = scmp.eq.s32.totalorder %s22, 1
      %p108 = por %p106, %p107
      %p110 = scmp.ne.s32.totalorder %s95, %s109
      %p111 = scmp.eq.s32.totalorder %s22, 0
      %p112 = por %p110, %p111
      %s114 = sadd.s32 %s113, 1
      %p117 = scmp.eq.s32.totalorder %s16, 1
      %p118 = scmp.ne.s32.totalorder %s113, %s115
      %p119 = scmp.eq.s32.totalorder %s16, 0
      %p120 = por %p118, %p119
      %p121 = scmp.ne.s32.totalorder %s113, %s115
      %p122 = scmp.eq.s32.totalorder %s21, 1
      %p123 = por %p121, %p122
      %p124 = scmp.ne.s32.totalorder %s115, %s116
      %p125 = scmp.eq.s32.totalorder %s21, 0
      %p126 = por %p124, %p125
      %p127 = scmp.ne.s32.totalorder %s115, %s116
      %p128 = scmp.eq.s32.totalorder %s22, 1
      %p129 = por %p127, %p128
      %p131 = scmp.ne.s32.totalorder %s116, %s130
      %p132 = scmp.eq.s32.totalorder %s22, 0
      %p133 = por %p131, %p132
      %s135 = sadd.s32 %s134, 1
      %p138 = scmp.eq.s32.totalorder %s16, 1
      %p139 = scmp.ne.s32.totalorder %s134, %s136
      %p140 = scmp.eq.s32.totalorder %s16, 0
      %p141 = por %p139, %p140
      %p142 = scmp.ne.s32.totalorder %s134, %s136
      %p143 = scmp.eq.s32.totalorder %s21, 1
      %p144 = por %p142, %p143
      %p145 = scmp.ne.s32.totalorder %s136, %s137
      %p146 = scmp.eq.s32.totalorder %s21, 0
      %p147 = por %p145, %p146
      %p148 = scmp.ne.s32.totalorder %s136, %s137
      %p149 = scmp.eq.s32.totalorder %s22, 1
      %p150 = por %p148, %p149
      %p152 = scmp.ne.s32.totalorder %s137, %s151
      %p153 = scmp.eq.s32.totalorder %s22, 0
      %p154 = por %p152, %p153
      %s155 = ssub.s32 %s16, %s23
      %p156 = scmp.eq.s32.totalorder %s155, 0
      %s158 = sadd.s32 %s157, 1
      %s159 = scalar_select %p156, %s157, %s158
      %p162 = pneg %p156
      %p163 = scmp.eq.s32.totalorder %s16, 1
      %p164 = por %p162, %p163
      %p165 = scmp.ne.s32.totalorder %s157, %s160
      %p166 = scmp.eq.s32.totalorder %s16, 0
      %p167 = por %p165, %p166
      %p168 = scmp.ne.s32.totalorder %s157, %s160
      %p169 = scmp.eq.s32.totalorder %s21, 1
      %p170 = por %p168, %p169
      %p171 = scmp.ne.s32.totalorder %s160, %s161
      %p172 = scmp.eq.s32.totalorder %s21, 0
      %p173 = por %p171, %p172
      %p174 = scmp.ne.s32.totalorder %s160, %s161
      %p175 = scmp.eq.s32.totalorder %s22, 1
      %p176 = por %p174, %p175
      %p178 = scmp.ne.s32.totalorder %s161, %s177
      %p179 = scmp.eq.s32.totalorder %s22, 0
      %p180 = por %p178, %p179
      %s181 = ssub.s32 %s16, %s23
      %p182 = scmp.eq.s32.totalorder %s181, 0
      %s184 = sadd.s32 %s183, 1
      %s185 = scalar_select %p182, %s183, %s184
      %p188 = pneg %p182
      %p189 = scmp.eq.s32.totalorder %s16, 1
      %p190 = por %p188, %p189
      %p191 = scmp.ne.s32.totalorder %s183, %s186
      %p192 = scmp.eq.s32.totalorder %s16, 0
      %p193 = por %p191, %p192
      %p194 = scmp.ne.s32.totalorder %s183, %s186
      %p195 = scmp.eq.s32.totalorder %s21, 1
      %p196 = por %p194, %p195
      %p197 = scmp.ne.s32.totalorder %s186, %s187
      %p198 = scmp.eq.s32.totalorder %s21, 0
      %p199 = por %p197, %p198
      %p200 = scmp.ne.s32.totalorder %s186, %s187
      %p201 = scmp.eq.s32.totalorder %s22, 1
      %p202 = por %p200, %p201
      %p204 = scmp.ne.s32.totalorder %s187, %s203
      %p205 = scmp.eq.s32.totalorder %s22, 0
      %p206 = por %p204, %p205
      %p207 = scmp.le.s32.totalorder 1, %s16
      %p208 = scmp.lt.s32.totalorder %s16, 3
      %p209 = pnand %p207, %p208
      %p210 = pneg %p209
      // Predicated region
      $region9: #{bond_layer.1} parent=5 // pred_check
        _
      $region10: #{bond_layer.1} parent=5 // pred_check_branch
        %212 = sbr.rel (%p209) target = $region12
      $region11: #{bond_layer.1} parent=5 // pred_region
        %s213 = ssub.s32 %s16, 1
        // Predicated region
        $region13: #{bond_layer.1} parent=11 // pred_check
          %p214 = pneg %p63
        $region14: #{bond_layer.1} parent=11 // pred_check_branch
          %216 = sbr.rel (%p214) target = $region16
        $region15: #{bond_layer.1} parent=11 // pred_region
          _
        $region16: #{bond_layer.1} parent=11 // pred_fallthru
          _
        // Predicated region
        $region17: #{bond_layer.1} parent=11 // pred_check
          %p217 = pneg %p84
        $region18: #{bond_layer.1} parent=11 // pred_check_branch
          %219 = sbr.rel (%p217) target = $region20
        $region19: #{bond_layer.1} parent=11 // pred_region
          _
        $region20: #{bond_layer.1} parent=11 // pred_fallthru
          _
        // Predicated region
        $region21: #{bond_layer.1} parent=11 // pred_check
          %p220 = pneg %p105
        $region22: #{bond_layer.1} parent=11 // pred_check_branch
          %222 = sbr.rel (%p220) target = $region24
        $region23: #{bond_layer.1} parent=11 // pred_region
          _
        $region24: #{bond_layer.1} parent=11 // pred_fallthru
          _
        // Predicated region
        $region25: #{bond_layer.1} parent=11 // pred_check
          %p223 = pneg %p126
        $region26: #{bond_layer.1} parent=11 // pred_check_branch
          %225 = sbr.rel (%p223) target = $region28
        $region27: #{bond_layer.1} parent=11 // pred_region
          _
        $region28: #{bond_layer.1} parent=11 // pred_fallthru
          _
        // Predicated region
        $region29: #{bond_layer.1} parent=11 // pred_check
          %p226 = pneg %p147
        $region30: #{bond_layer.1} parent=11 // pred_check_branch
          %228 = sbr.rel (%p226) target = $region32
        $region31: #{bond_layer.1} parent=11 // pred_region
          _
        $region32: #{bond_layer.1} parent=11 // pred_fallthru
          _
      $region12: #{bond_layer.1} parent=5 // pred_fallthru
        _
      %p229 = scmp.lt.s32.totalorder %s16, 2
      // Predicated region
      $region33: #{bond_layer.1} parent=5 // pred_check
        %p230 = pneg %p229
      $region34: #{bond_layer.1} parent=5 // pred_check_branch
        %232 = sbr.rel (%p230) target = $region36
      $region35: #{bond_layer.1} parent=5 // pred_region
        // Predicated region
        $region37: #{bond_layer.1} parent=35 // pred_check
          %p233 = pneg %p36
        $region38: #{bond_layer.1} parent=35 // pred_check_branch
          %235 = sbr.rel (%p233) target = $region40
        $region39: #{bond_layer.1} parent=35 // pred_region
          %p236 = scmp.lt.s32.totalorder %s16, 1
          %s237 = scalar_select %p236, %s16, 1
          %s238 = smul.addr %s237, 8
          %s239 = scalar_lea.vmem %s0, %s238
        $region40: #{bond_layer.1} parent=35 // pred_fallthru
          _
        // Predicated region
        $region41: #{bond_layer.1} parent=35 // pred_check
          %p240 = pneg %p167
        $region42: #{bond_layer.1} parent=35 // pred_check_branch
          %242 = sbr.rel (%p240) target = $region44
        $region43: #{bond_layer.1} parent=35 // pred_region
          %p243 = scmp.lt.s32.totalorder %s16, 1
          %s244 = scalar_select %p243, %s16, 1
          %s245 = smul.addr %s244, 8
          %s246 = scalar_lea.vmem %s6, %s245
        $region44: #{bond_layer.1} parent=35 // pred_fallthru
          _
      $region36: #{bond_layer.1} parent=5 // pred_fallthru
        _
      %p247 = scmp.le.s32.totalorder 1, %s16
      %p248 = scmp.lt.s32.totalorder %s16, 3
      %p249 = pnand %p247, %p248
      %p250 = pneg %p249
      // Predicated region
      $region45: #{bond_layer.1} parent=5 // pred_check
        _
      $region46: #{bond_layer.1} parent=5 // pred_check_branch
        %252 = sbr.rel (%p249) target = $region48
      $region47: #{bond_layer.1} parent=5 // pred_region
        %s253 = ssub.s32 %s16, 1
        %p254 = scmp.lt.s32.totalorder %s21, 1
        %s255 = scalar_select %p254, %s21, 1
        %s256 = smul.addr %s255, 8
        %s257 = scalar_lea.vmem %s0, %s256
        %p258 = pneg %p42
        %p259 = pneg %p39
        %p260 = pneg %p63
        %p261 = pneg %p60
        %p262 = pneg %p84
        %p263 = pneg %p81
        %p264 = pneg %p105
        %p265 = pneg %p102
        %p266 = pneg %p126
        %p267 = pneg %p123
        %p268 = pneg %p147
        %p269 = pneg %p144
        %p270 = scmp.lt.s32.totalorder %s21, 1
        %s271 = scalar_select %p270, %s21, 1
        %s272 = smul.addr %s271, 8
        %s273 = scalar_lea.vmem %s6, %s272
        %p274 = pneg %p173
        %p275 = pneg %p170
        %p276 = pneg %p199
        %p277 = pneg %p196
        %s278 = sand.u32 %s186, 1
        %s279 = scalar_lea.sflag [#allocation3], %s278
        %s280 = sand.u32 %s186, 1
        %s281 = smul.addr %s280, 8
        %s282 = scalar_lea.vmem [#allocation2], %s281
        %p283 = scmp.lt.s32.totalorder %s21, 1
        %s284 = scalar_select %p283, %s21, 1
        %s285 = smul.addr %s284, 8
        %s286 = scalar_lea.vmem %s0, %s285
        %p287 = scmp.lt.s32.totalorder %s21, 1
        %s288 = scalar_select %p287, %s21, 1
        %s289 = smul.addr %s288, 8
        %s290 = scalar_lea.vmem %s6, %s289
        %v291 = vld [vmem:[%s286] sm:$0xff]
        %v292 = vld [vmem:[%s1] sm:$0xff]
        %v293 = vld [vmem:[%s1 + $0x8] sm:$0xff]
        %v294 = vld [vmem:[%s1 + $0x10] sm:$0xff]
        %v295 = vld [vmem:[%s1 + $0x18] sm:$0xff]
        %v296 = vld [vmem:[%s2] sm:$0x1]
        %v298 = vlaneseq
        %v299 = vshrl.u32 %v298, 7
        %v300 = vsub.s32 0, %v299
        %v301 = vrot.slane %v296, %v300
        %vm303 = vcmask 261120
        %v305 = vsel %vm303, %v291, 0
        %307 = vmatprep.subr.mxu0 0.0
        %308 = vmatpush1.msra.mxu0 0.0
        %309 = vmatprep.subr.mxu0 0.0
        %310 = vmatpush1.msra.mxu0 0.0
        %311 = vmatprep.subr.mxu0 0.0
        %312 = vmatpush1.msra.mxu0 0.0
        %313 = vmatprep.subr.mxu0 0.0
        %314 = vmatpush1.msra.mxu0 0.0
        %315 = vmatprep.subr.mxu0 0.0
        %316 = vmatpush1.msra.mxu0 0.0
        %317 = vmatprep.subr.mxu0 0.0
        %318 = vmatpush1.msra.mxu0 0.0
        %319 = vmatprep.subr.mxu0 0.0
        %320 = vmatpush1.msra.mxu0 0.0
        %321 = vmatprep.subr.mxu0 0.0
        %322 = vmatpush1.msra.mxu0 0.0
        %323 = vmatprep.subr.mxu0 0.0
        %324 = vmatpush1.msra.mxu0 0.0
        %325 = vmatprep.subr.mxu0 0.0
        %326 = vmatpush1.msra.mxu0 0.0
        %327 = vmatprep.subr.mxu0 0.0
        %328 = vmatpush1.msra.mxu0 0.0
        %329 = vmatprep.subr.mxu0 0.0
        %330 = vmatpush1.msra.mxu0 0.0
        %331 = vmatprep.subr.mxu0 0.0
        %332 = vmatpush1.msra.mxu0 %v295
        %333 = vmatprep.subr.mxu0 0.0
        %334 = vmatpush1.msra.mxu0 %v294
        %335 = vmatprep.subr.mxu0 0.0
        %336 = vmatpush1.msra.mxu0 %v293
        %337 = vmatprep.subr.mxu0 0.0
        %338 = vmatpush1.msra.mxu0 %v292
        %339 = vmatprep.subr.mxu0 0.0
        %340 = vmatpush2.msra.mxu0 0.0
        %341 = vmatprep.subr.mxu0 0.0
        %342 = vmatpush2.msra.mxu0 0.0
        %343 = vmatprep.subr.mxu0 0.0
        %344 = vmatpush2.msra.mxu0 0.0
        %345 = vmatprep.subr.mxu0 0.0
        %346 = vmatpush2.msra.mxu0 0.0
        %347 = vmatprep.subr.mxu0 0.0
        %348 = vmatpush2.msra.mxu0 0.0
        %349 = vmatprep.subr.mxu0 0.0
        %350 = vmatpush2.msra.mxu0 0.0
        %351 = vmatprep.subr.mxu0 0.0
        %352 = vmatpush2.msra.mxu0 0.0
        %353 = vmatprep.subr.mxu0 0.0
        %354 = vmatpush2.msra.mxu0 0.0
        %355 = vmatprep.subr.mxu0 0.0
        %356 = vmatpush2.msra.mxu0 0.0
        %357 = vmatprep.subr.mxu0 0.0
        %358 = vmatpush2.msra.mxu0 0.0
        %359 = vmatprep.subr.mxu0 0.0
        %360 = vmatpush2.msra.mxu0 0.0
        %361 = vmatprep.subr.mxu0 0.0
        %362 = vmatpush2.msra.mxu0 0.0
        %363 = vmatprep.subr.mxu0 0.0
        %364 = vmatpush2.msra.mxu0 0.0
        %365 = vmatprep.subr.mxu0 0.0
        %366 = vmatpush2.msra.mxu0 0.0
        %367 = vmatprep.subr.mxu0 0.0
        %368 = vmatpush2.msra.mxu0 0.0
        %369 = vmatprep.subr.mxu0 0.0
        %370 = vmatpush2.msra.mxu0 0.0
        %371 = vmatprep.mubr.f32.mxu0 0.0
        %372 = vmatmul.mubr.f32.gmra.mxu0 %v305
        %v373 = vpop.f32.mrf.mxu0
        %v374 = vadd.f32 %v301, %v373
        %v375 = vpop.f32.mrf.mxu0
        %376 = vdwg.mxu0
        %v377 = vmul.f32 %v374, %v374
        %v378 = vld [vmem:[%s5] sm:$0xff]
        %v379 = vld [vmem:[%s5 + $0x8] sm:$0xff]
        %v380 = vld [vmem:[%s5 + $0x10] sm:$0xff]
        %v381 = vld [vmem:[%s5 + $0x18] sm:$0xff]
        %v382 = vld [vmem:[%s5 + $0x20] sm:$0xff]
        %v383 = vld [vmem:[%s5 + $0x28] sm:$0xff]
        %v384 = vld [vmem:[%s5 + $0x30] sm:$0xff]
        %v385 = vld [vmem:[%s5 + $0x38] sm:$0xff]
        %v386 = vld [vmem:[%s5 + $0x40] sm:$0xff]
        %v387 = vld [vmem:[%s5 + $0x48] sm:$0xff]
        %v388 = vld [vmem:[%s5 + $0x50] sm:$0xff]
        %v389 = vld [vmem:[%s5 + $0x58] sm:$0xff]
        %v390 = vld [vmem:[%s5 + $0x60] sm:$0xff]
        %v391 = vld [vmem:[%s5 + $0x68] sm:$0xff]
        %v392 = vld [vmem:[%s5 + $0x70] sm:$0xff]
        %v393 = vld [vmem:[%s5 + $0x78] sm:$0xff]
        %v394 = vld [vmem:[%s3] sm:$0x1]
        %395 = vmatprep.subr.mxu0 0.0
        %396 = vmatpush1.msra.mxu0 %v393
        %397 = vmatprep.subr.mxu0 0.0
        %398 = vmatpush1.msra.mxu0 %v392
        %399 = vmatprep.subr.mxu0 0.0
        %400 = vmatpush1.msra.mxu0 %v391
        %401 = vmatprep.subr.mxu0 0.0
        %402 = vmatpush1.msra.mxu0 %v390
        %403 = vmatprep.subr.mxu0 0.0
        %404 = vmatpush1.msra.mxu0 %v389
        %405 = vmatprep.subr.mxu0 0.0
        %406 = vmatpush1.msra.mxu0 %v388
        %407 = vmatprep.subr.mxu0 0.0
        %408 = vmatpush1.msra.mxu0 %v387
        %409 = vmatprep.subr.mxu0 0.0
        %410 = vmatpush1.msra.mxu0 %v386
        %411 = vmatprep.subr.mxu0 0.0
        %412 = vmatpush1.msra.mxu0 %v385
        %413 = vmatprep.subr.mxu0 0.0
        %414 = vmatpush1.msra.mxu0 %v384
        %415 = vmatprep.subr.mxu0 0.0
        %416 = vmatpush1.msra.mxu0 %v383
        %417 = vmatprep.subr.mxu0 0.0
        %418 = vmatpush1.msra.mxu0 %v382
        %419 = vmatprep.subr.mxu0 0.0
        %420 = vmatpush1.msra.mxu0 %v381
        %421 = vmatprep.subr.mxu0 0.0
        %422 = vmatpush1.msra.mxu0 %v380
        %423 = vmatprep.subr.mxu0 0.0
        %424 = vmatpush1.msra.mxu0 %v379
        %425 = vmatprep.subr.mxu0 0.0
        %426 = vmatpush1.msra.mxu0 %v378
        %427 = vmatprep.subr.mxu0 0.0
        %428 = vmatpush2.msra.mxu0 0.0
        %429 = vmatprep.subr.mxu0 0.0
        %430 = vmatpush2.msra.mxu0 0.0
        %431 = vmatprep.subr.mxu0 0.0
        %432 = vmatpush2.msra.mxu0 0.0
        %433 = vmatprep.subr.mxu0 0.0
        %434 = vmatpush2.msra.mxu0 0.0
        %435 = vmatprep.subr.mxu0 0.0
        %436 = vmatpush2.msra.mxu0 0.0
        %437 = vmatprep.subr.mxu0 0.0
        %438 = vmatpush2.msra.mxu0 0.0
        %439 = vmatprep.subr.mxu0 0.0
        %440 = vmatpush2.msra.mxu0 0.0
        %441 = vmatprep.subr.mxu0 0.0
        %442 = vmatpush2.msra.mxu0 0.0
        %443 = vmatprep.subr.mxu0 0.0
        %444 = vmatpush2.msra.mxu0 0.0
        %445 = vmatprep.subr.mxu0 0.0
        %446 = vmatpush2.msra.mxu0 0.0
        %447 = vmatprep.subr.mxu0 0.0
        %448 = vmatpush2.msra.mxu0 0.0
        %449 = vmatprep.subr.mxu0 0.0
        %450 = vmatpush2.msra.mxu0 0.0
        %451 = vmatprep.subr.mxu0 0.0
        %452 = vmatpush2.msra.mxu0 0.0
        %453 = vmatprep.subr.mxu0 0.0
        %454 = vmatpush2.msra.mxu0 0.0
        %455 = vmatprep.subr.mxu0 0.0
        %456 = vmatpush2.msra.mxu0 0.0
        %457 = vmatprep.subr.mxu0 0.0
        %458 = vmatpush2.msra.mxu0 0.0
        %459 = vmatprep.mubr.f32.mxu0 0.0
        %460 = vmatmul.mubr.f32.gmra.mxu0 %v377
        %v461 = vpop.f32.mrf.mxu0
        %v462 = vadd.f32 1e-06, %v461
        %v463 = vpop.f32.mrf.mxu0
        %464 = vdwg.mxu0
        %v465 = vrsqrt.pop %v462
        %v467 = vlaneseq
        %v468 = vshrl.u32 %v467, 7
        %v469 = vsub.s32 0, %v468
        %v470 = vrot.slane %v394, %v469
        %473 = vset.pattern.permute.xlu0 0
        %474 = vperm.xlu0 %473, %v465
        %v475 = vpop.permute.xlu0 %474
        %v477 = vmul.f32 %v470, %v475
        %v478 = vld [vmem:[%s290] sm:$0xff]
        %v479 = vmul.f32 %v374, %v477
        %v480 = vadd.f32 %v478, %v479
        %v481 = vld [vmem:[%s4] sm:$0x1]
        %v483 = vlaneseq
        %v484 = vshrl.u32 %v483, 7
        %v485 = vsub.s32 0, %v484
        %v486 = vrot.slane %v481, %v485
        %v488 = vadd.f32 %v480, %v486
        %489 = vst [vmem:[%s282] sm:$0xff] %v488
        %s490 = sand.u32 %s186, 1
        %s491 = scalar_lea.sflag [#allocation3], %s490
        %s492 = sand.u32 %s186, 1
        %s493 = smul.addr %s492, 8
        %s494 = scalar_lea.vmem [#allocation2], %s493
        // Predicated region
        $region49: #{bond_layer.1} parent=47 // pred_check
          %p495 = pneg %p196
        $region50: #{bond_layer.1} parent=47 // pred_check_branch
          %497 = sbr.rel (%p495) target = $region52
        $region51: #{bond_layer.1} parent=47 // pred_region
          %s499 = ssub.s32 128, 128
          %500 = vsyncadd %s491, %s499
          %s501 = smul.addr %s21, 128
          %s502 = scalar_lea.hbm %s7, %s501
          %s504 = sshll.u32 %s494, 4
          %s505 = int_to_ptr.vmem [resolvable:$true] %s504
          %507 = dma.vmem_to_hbm [thread:$0]  %s505, 128, %s502, %s491
        $region52: #{bond_layer.1} parent=47 // pred_fallthru
          _
      $region48: #{bond_layer.1} parent=5 // pred_fallthru
        _
      %p508 = scmp.le.s32.totalorder 2, %s16
      // Predicated region
      $region53: #{bond_layer.1} parent=5 // pred_check
        %p509 = pneg %p508
      $region54: #{bond_layer.1} parent=5 // pred_check_branch
        %511 = sbr.rel (%p509) target = $region56
      $region55: #{bond_layer.1} parent=5 // pred_region
        %s512 = ssub.s32 %s16, 2
        // Predicated region
        $region57: #{bond_layer.1} parent=55 // pred_check
          %p513 = pneg %p202
        $region58: #{bond_layer.1} parent=55 // pred_check_branch
          %515 = sbr.rel (%p513) target = $region60
        $region59: #{bond_layer.1} parent=55 // pred_region
          %s516 = sand.u32 %s187, 1
          %s517 = scalar_lea.sflag [#allocation3], %s516
          %s518 = sand.u32 %s187, 1
          %s519 = smul.addr %s518, 8
          %s520 = scalar_lea.vmem [#allocation2], %s519
          %521 = dma.done %s517, 128
        $region60: #{bond_layer.1} parent=55 // pred_fallthru
          _
      $region56: #{bond_layer.1} parent=5 // pred_fallthru
        _
    $region6: #{bond_layer.1} parent=1 // loop_footer
      %s20 = sadd.s32 1, %s16
    $region7: #{bond_layer.1} parent=1 // loop_footer_branch
      %15 = sbr.rel target = $region3
    $region8: #{bond_layer.1} parent=1 // loop_exit
      _
    %522 = vsyncpa [#allocation3], 1
    %s523 = scalar_lea.sflag [#allocation3], 1
    %524 = vsyncpa %s523, 1

</llo_original>
